<compile_context>
chip_gen: v6e
topology: v6e:2x2x1
jax: 0.10.0
libtpu: 0.0.40
codegen_flags: <defaults>
</compile_context>

<pallas_src>
import jax
import jax.numpy as jnp
import numpy as np
from jax.experimental import pallas as pl
from jax.experimental.pallas import tpu as pltpu


def _pool_selector(kh: int, kw: int, W: int, OW: int, dtype) -> np.ndarray:
    """(kh*W, OW) constant: S[r*W + w, ow] = 1/(kh*kw) if w // kw == ow else 0.

    Trailing columns not covered by any window (W % kw != 0) map to no ow and
    are therefore zeroed automatically.
    """
    w = np.arange(W)[:, None]
    o = np.arange(OW)[None, :]
    col = ((w // kw) == o).astype(np.float32)          # (W, OW)
    sel = np.tile(col, (kh, 1)) / float(kh * kw)       # (kh*W, OW)
    return sel.astype(dtype)


def _avgpool_kernel(x_ref, s_ref, o_ref):
    # x_ref: (TM, kh*W)  TM = TN*OH rows; lane chunk r holds input row oh*kh + r.
    # s_ref: (kh*W, OW)  combined row+column pooling selector, scale folded in.
    # o_ref: (TM, OW)
    o_ref[...] = jnp.dot(
        x_ref[...], s_ref[...], preferred_element_type=jnp.float32
    ).astype(o_ref.dtype)


def avg_pooling(x: jnp.ndarray, kernel_size) -> jnp.ndarray:
    """Forward pass of AvgPooling: NCHW input, stride == kernel_size, no padding."""
    B, C, H, W = x.shape
    kh, kw = kernel_size
    assert kh > 0 and kw > 0 and H >= kh and W >= kw, "kernel larger than input"
    OH = (H - kh) // kh + 1
    OW = (W - kw) // kw + 1
    N = B * C
    itemsize = jnp.dtype(x.dtype).itemsize

    # Drop trailing rows never covered by a window (no-op when H % kh == 0).
    if H != OH * kh:
        x = x[:, :, : OH * kh, :]
    # Trailing uncovered columns (W % kw != 0) are zeroed by the selector.

    # Free contiguous view: per channel (OH*kh, W) == (OH, kh*W); stack -> 2-D.
    x2 = x.reshape(N * OH, kh * W)

    # Selector in the input dtype so bf16 inputs hit the MXU natively.
    sel = jnp.asarray(_pool_selector(kh, kw, W, OW, x.dtype))

    # Channels per grid step: keep 2 * (in_block + out_block) under ~25 MiB so
    # the double-buffered pipeline fits every chip's scoped VMEM comfortably.
    per_chan_bytes = (OH * kh * W + OH * OW) * itemsize
    tn_cap = max(1, (12 * 1024 * 1024) // per_chan_bytes)
    if tn_cap >= N:
        TN = N
    else:
        TN = max(8, (tn_cap // 8) * 8)  # multiple of 8 keeps the block sublane-aligned
    # TODO(synk): for per-channel footprints >> 12 MiB (huge images) also tile
    # OH / W inside the block; not needed for typical image sizes.
    TM = TN * OH
    grid = (pl.cdiv(N, TN),)

    cost = pl.CostEstimate(
        flops=2 * N * OH * (kh * W) * OW,
        transcendentals=0,
        bytes_accessed=(N * OH * kh * W + N * OH * OW + kh * W * OW) * itemsize,
    )

    out2 = pl.pallas_call(
        _avgpool_kernel,
        out_shape=jax.ShapeDtypeStruct((N * OH, OW), x.dtype),
        grid_spec=pltpu.PrefetchScalarGridSpec(
            num_scalar_prefetch=0,
            grid=grid,
            in_specs=[
                pl.BlockSpec((TM, kh * W), lambda n: (n, 0)),      # TN channels' rows
                pl.BlockSpec((kh * W, OW), lambda n: (0, 0)),      # selector (resident)
            ],
            out_specs=pl.BlockSpec((TM, OW), lambda n: (n, 0)),
        ),
        compiler_params=pltpu.CompilerParams(
            dimension_semantics=("parallel",),   # lets v7x shard over both TCs
            vmem_limit_bytes=40 * 1024 * 1024,
        ),
        cost_estimate=cost,
    )(x2, sel)

    return out2.reshape(B, C, OH, OW)


class AvgPooling:
    """Mirror of the PyTorch module's forward (inference only)."""

    def __init__(self, kernel_size):
        self.kernel_size = kernel_size

    def __call__(self, x):
        return avg_pooling(x, self.kernel_size)


def _reference_avg_pool(x, kernel_size):
    B, C, H, W = x.shape
    kh, kw = kernel_size
    OH = (H - kh) // kh + 1
    OW = (W - kw) // kw + 1
    xc = x[:, :, : OH * kh, : OW * kw]
    return xc.reshape(B, C, OH, kh, OW, kw).mean(axis=(3, 5))


if __name__ == "__main__":
    key = jax.random.PRNGKey(0)
    B, C, H, W = 2, 4, 16, 16
    x = jax.random.normal(key, (B, C, H, W), dtype=jnp.float32)

    # Primary test: 2x2 pooling, evenly divisible spatial dims.
    model = AvgPooling(kernel_size=(2, 2))
    out = jax.block_until_ready(model(x))
    ref = _reference_avg_pool(x, (2, 2))
    assert out.shape == (B, C, 8, 8), out.shape
    assert out.dtype == x.dtype, out.dtype
    np.testing.assert_allclose(np.asarray(out), np.asarray(ref), rtol=1e-5, atol=1e-5)

    # Secondary test: 3x3 pooling (H % kh != 0, W % kw != 0 path).
    out3 = jax.block_until_ready(AvgPooling(kernel_size=(3, 3))(x))
    ref3 = _reference_avg_pool(x, (3, 3))
    assert out3.shape == (B, C, 5, 5), out3.shape
    np.testing.assert_allclose(np.asarray(out3), np.asarray(ref3), rtol=1e-5, atol=1e-5)

    print("KERNEL_OK")
</pallas_src>

<mosaic_0001>
module attributes {stable_mosaic.version = 11 : i64} {
  func.func @_avgpool_kernel(%arg0: i32, %arg1: memref<64x32xf32, #tpu.memory_space<vmem>>, %arg2: memref<32x8xf32, #tpu.memory_space<vmem>>, %arg3: memref<64x8xf32, #tpu.memory_space<vmem>>) attributes {dimension_semantics = [#tpu.dimension_semantics<parallel>], iteration_bounds = array<i64: 1>, scalar_prefetch = 0 : i64, scratch_operands = 0 : i64, tpu.core_type = #tpu.core_type<tc>, window_params = [{transform_indices = @transform_0, window_bounds = array<i64: 64, 32>}, {pipeline_mode = #tpu.pipeline_mode<synchronous>, transform_indices = @transform_1, window_bounds = array<i64: 32, 8>}, {transform_indices = @transform_2, window_bounds = array<i64: 64, 8>}]} {
    %c0 = arith.constant 0 : index
    %c0_0 = arith.constant 0 : index
    %0 = vector.load %arg1[%c0, %c0_0] : memref<64x32xf32, #tpu.memory_space<vmem>>, vector<64x32xf32>
    %c0_1 = arith.constant 0 : index
    %c0_2 = arith.constant 0 : index
    %1 = vector.load %arg2[%c0_1, %c0_2] : memref<32x8xf32, #tpu.memory_space<vmem>>, vector<32x8xf32>
    %cst = arith.constant dense<0.000000e+00> : vector<64x8xf32>
    %2 = tpu.matmul %0, %1, %cst {dimension_numbers = #tpu.dot_dimension_numbers<[1], [0], [0], [1], [0, 0, 1, 1], [], []>} : vector<64x32xf32>, vector<32x8xf32>, vector<64x8xf32> -> vector<64x8xf32>
    %c0_3 = arith.constant 0 : index
    %c0_4 = arith.constant 0 : index
    %3 = vector.load %arg3[%c0_3, %c0_4] : memref<64x8xf32, #tpu.memory_space<vmem>>, vector<64x8xf32>
    tpu.vector_store %arg3[%c0_3, %c0_4], %2 {strides = array<i32>} : memref<64x8xf32, #tpu.memory_space<vmem>>, vector<64x8xf32>,
    return
  }
  func.func @transform_0(%arg0: i32) -> (i32, i32) {
    %c0_i32 = arith.constant 0 : i32
    %c0_i32_0 = arith.constant 0 : i32
    return %arg0, %c0_i32 : i32, i32
  }
  func.func @transform_1(%arg0: i32) -> (i32, i32) {
    %c0_i32 = arith.constant 0 : i32
    %c0_i32_0 = arith.constant 0 : i32
    %c0_i32_1 = arith.constant 0 : i32
    return %c0_i32, %c0_i32_0 : i32, i32
  }
  func.func @transform_2(%arg0: i32) -> (i32, i32) {
    %c0_i32 = arith.constant 0 : i32
    %c0_i32_0 = arith.constant 0 : i32
    return %arg0, %c0_i32 : i32, i32
  }
}

</mosaic_0001>

<llo_original>
// kernel: tpu_custom_call.1
$region0: #{tpu_custom_call.1}
  #allocation0 [shape = 'u32[]', space=smem, size = 0x4, offset = 0x4, fixed_abs, tag = 'smem constant byte address 0x4 - core index']
  #allocation1 [shape = 'u32[144,128]{1,0:T(1,128)}', space=vmem, size = 0x12000, scoped, tag = 'internal scratch']
  %s0 = inlined_call_operand.vmem [shape: f32[64,32], index: 0, kind: input, shape index: {}]
  %s1 = inlined_call_operand.vmem [shape: f32[32,8], index: 1, kind: input, shape index: {}]
  %s2 = inlined_call_operand.vmem [shape: f32[64,8], index: 2, kind: output, shape index: {}]
  %s3 = sld [smem:[#allocation0]]
  $region18: #{tpu_custom_call.1} parent=0
    _
  %s5 = ssub.s32 1, %s3
  %s6 = scalar_select 0, %s5, %s3
  // Predicated region
  $region2: #{tpu_custom_call.1} parent=0 // pred_check
    _
  $region3: #{tpu_custom_call.1} parent=0 // pred_check_branch
    %8 = sbr.rel (0) target = $region5
  $region4: #{tpu_custom_call.1} parent=0 // pred_region
    _
  $region5: #{tpu_custom_call.1} parent=0 // pred_fallthru
    _
  // Predicated region
  $region6: #{tpu_custom_call.1} parent=0 // pred_check
    _
  $region7: #{tpu_custom_call.1} parent=0 // pred_check_branch
    %10 = sbr.rel (0) target = $region9
  $region8: #{tpu_custom_call.1} parent=0 // pred_region
    _
  $region9: #{tpu_custom_call.1} parent=0 // pred_fallthru
    _
  %v11 = vld [vmem:[%s0] sm:$0xff]
  %v12 = vld [vmem:[%s0 + $0x8] sm:$0xff]
  %v13 = vld [vmem:[%s0 + $0x10] sm:$0xff]
  %v14 = vld [vmem:[%s0 + $0x18] sm:$0xff]
  %v15 = vld [vmem:[%s0 + $0x20] sm:$0xff]
  %v16 = vld [vmem:[%s0 + $0x28] sm:$0xff]
  %v17 = vld [vmem:[%s0 + $0x30] sm:$0xff]
  %v18 = vld [vmem:[%s0 + $0x38] sm:$0xff]
  %v19 = vld [vmem:[%s1] sm:$0xff]
  %v20 = vld [vmem:[%s1 + $0x8] sm:$0xff]
  %v21 = vld [vmem:[%s1 + $0x10] sm:$0xff]
  %v22 = vld [vmem:[%s1 + $0x18] sm:$0xff]
  %vm23 = vcmask 261120
  %v25 = vsel %vm23, %v11, 0
  %v28 = vsel %vm23, %v12, 0
  %v31 = vsel %vm23, %v13, 0
  %v34 = vsel %vm23, %v14, 0
  %v37 = vsel %vm23, %v15, 0
  %v40 = vsel %vm23, %v16, 0
  %v43 = vsel %vm23, %v17, 0
  %v46 = vsel %vm23, %v18, 0
  %48 = vmatprep.subr.mxu0 0.0
  %49 = vmatpush1.msra.mxu0 0.0
  %50 = vmatprep.subr.mxu0 0.0
  %51 = vmatpush1.msra.mxu0 0.0
  %52 = vmatprep.subr.mxu0 0.0
  %53 = vmatpush1.msra.mxu0 0.0
  %54 = vmatprep.subr.mxu0 0.0
  %55 = vmatpush1.msra.mxu0 0.0
  %56 = vmatprep.subr.mxu0 0.0
  %57 = vmatpush1.msra.mxu0 0.0
  %58 = vmatprep.subr.mxu0 0.0
  %59 = vmatpush1.msra.mxu0 0.0
  %60 = vmatprep.subr.mxu0 0.0
  %61 = vmatpush1.msra.mxu0 0.0
  %62 = vmatprep.subr.mxu0 0.0
  %63 = vmatpush1.msra.mxu0 0.0
  %64 = vmatprep.subr.mxu0 0.0
  %65 = vmatpush1.msra.mxu0 0.0
  %66 = vmatprep.subr.mxu0 0.0
  %67 = vmatpush1.msra.mxu0 0.0
  %68 = vmatprep.subr.mxu0 0.0
  %69 = vmatpush1.msra.mxu0 0.0
  %70 = vmatprep.subr.mxu0 0.0
  %71 = vmatpush1.msra.mxu0 0.0
  %72 = vmatprep.subr.mxu0 0.0
  %73 = vmatpush1.msra.mxu0 %v22
  %74 = vmatprep.subr.mxu0 0.0
  %75 = vmatpush1.msra.mxu0 %v21
  %76 = vmatprep.subr.mxu0 0.0
  %77 = vmatpush1.msra.mxu0 %v20
  %78 = vmatprep.subr.mxu0 0.0
  %79 = vmatpush1.msra.mxu0 %v19
  %80 = vmatprep.subr.mxu0 0.0
  %81 = vmatpush2.msra.mxu0 0.0
  %82 = vmatprep.subr.mxu0 0.0
  %83 = vmatpush2.msra.mxu0 0.0
  %84 = vmatprep.subr.mxu0 0.0
  %85 = vmatpush2.msra.mxu0 0.0
  %86 = vmatprep.subr.mxu0 0.0
  %87 = vmatpush2.msra.mxu0 0.0
  %88 = vmatprep.subr.mxu0 0.0
  %89 = vmatpush2.msra.mxu0 0.0
  %90 = vmatprep.subr.mxu0 0.0
  %91 = vmatpush2.msra.mxu0 0.0
  %92 = vmatprep.subr.mxu0 0.0
  %93 = vmatpush2.msra.mxu0 0.0
  %94 = vmatprep.subr.mxu0 0.0
  %95 = vmatpush2.msra.mxu0 0.0
  %96 = vmatprep.subr.mxu0 0.0
  %97 = vmatpush2.msra.mxu0 0.0
  %98 = vmatprep.subr.mxu0 0.0
  %99 = vmatpush2.msra.mxu0 0.0
  %100 = vmatprep.subr.mxu0 0.0
  %101 = vmatpush2.msra.mxu0 0.0
  %102 = vmatprep.subr.mxu0 0.0
  %103 = vmatpush2.msra.mxu0 0.0
  %104 = vmatprep.subr.mxu0 0.0
  %105 = vmatpush2.msra.mxu0 0.0
  %106 = vmatprep.subr.mxu0 0.0
  %107 = vmatpush2.msra.mxu0 0.0
  %108 = vmatprep.subr.mxu0 0.0
  %109 = vmatpush2.msra.mxu0 0.0
  %110 = vmatprep.subr.mxu0 0.0
  %111 = vmatpush2.msra.mxu0 0.0
  %112 = vmatprep.mubr.f32.mxu0 0.0
  %113 = vmatmul.mubr.f32.gmra.mxu0 %v25
  %v114 = vpop.f32.mrf.mxu0
  %v115 = vadd.f32 0.0, %v114
  %v116 = vpop.f32.mrf.mxu0
  %117 = vmatprep.mubr.f32.mxu0 0.0
  %118 = vmatmul.mubr.f32.gmra.mxu0 %v28
  %v119 = vpop.f32.mrf.mxu0
  %v120 = vadd.f32 0.0, %v119
  %v121 = vpop.f32.mrf.mxu0
  %122 = vmatprep.mubr.f32.mxu0 0.0
  %123 = vmatmul.mubr.f32.gmra.mxu0 %v31
  %v124 = vpop.f32.mrf.mxu0
  %v125 = vadd.f32 0.0, %v124
  %v126 = vpop.f32.mrf.mxu0
  %127 = vmatprep.mubr.f32.mxu0 0.0
  %128 = vmatmul.mubr.f32.gmra.mxu0 %v34
  %v129 = vpop.f32.mrf.mxu0
  %v130 = vadd.f32 0.0, %v129
  %v131 = vpop.f32.mrf.mxu0
  %132 = vmatprep.mubr.f32.mxu0 0.0
  %133 = vmatmul.mubr.f32.gmra.mxu0 %v37
  %v134 = vpop.f32.mrf.mxu0
  %v135 = vadd.f32 0.0, %v134
  %v136 = vpop.f32.mrf.mxu0
  %137 = vmatprep.mubr.f32.mxu0 0.0
  %138 = vmatmul.mubr.f32.gmra.mxu0 %v40
  %v139 = vpop.f32.mrf.mxu0
  %v140 = vadd.f32 0.0, %v139
  %v141 = vpop.f32.mrf.mxu0
  %142 = vmatprep.mubr.f32.mxu0 0.0
  %143 = vmatmul.mubr.f32.gmra.mxu0 %v43
  %v144 = vpop.f32.mrf.mxu0
  %v145 = vadd.f32 0.0, %v144
  %v146 = vpop.f32.mrf.mxu0
  %147 = vmatprep.mubr.f32.mxu0 0.0
  %148 = vmatmul.mubr.f32.gmra.mxu0 %v46
  %v149 = vpop.f32.mrf.mxu0
  %v150 = vadd.f32 0.0, %v149
  %v151 = vpop.f32.mrf.mxu0
  %152 = vdwg.mxu0
  %vm153 = vcmask 64512
  %154 = vst.msk [vmem:[%s2] sm:$0xff] %vm153, %v115
  %155 = vst.msk [vmem:[%s2 + $0x8] sm:$0xff] %vm153, %v120
  %156 = vst.msk [vmem:[%s2 + $0x10] sm:$0xff] %vm153, %v125
  %157 = vst.msk [vmem:[%s2 + $0x18] sm:$0xff] %vm153, %v130
  %158 = vst.msk [vmem:[%s2 + $0x20] sm:$0xff] %vm153, %v135
  %159 = vst.msk [vmem:[%s2 + $0x28] sm:$0xff] %vm153, %v140
  %160 = vst.msk [vmem:[%s2 + $0x30] sm:$0xff] %vm153, %v145
  %161 = vst.msk [vmem:[%s2 + $0x38] sm:$0xff] %vm153, %v150
  // Predicated region
  $region10: #{tpu_custom_call.1} parent=0 // pred_check
    _
  $region11: #{tpu_custom_call.1} parent=0 // pred_check_branch
    %163 = sbr.rel (0) target = $region13
  $region12: #{tpu_custom_call.1} parent=0 // pred_region
    _
  $region13: #{tpu_custom_call.1} parent=0 // pred_fallthru
    _
  // Predicated region
  $region14: #{tpu_custom_call.1} parent=0 // pred_check
    _
  $region15: #{tpu_custom_call.1} parent=0 // pred_check_branch
    %165 = sbr.rel (0) target = $region17
  $region16: #{tpu_custom_call.1} parent=0 // pred_region
    _
  $region17: #{tpu_custom_call.1} parent=0 // pred_fallthru
    _

</llo_original>
